<compile_context>
chip_gen: v7x
topology: tpu7x:2x2x1
jax: 0.10.0
libtpu: 0.0.40
codegen_flags: <defaults>
</compile_context>

<pallas_src>
import functools

import numpy as np

import jax
import jax.numpy as jnp
from jax import lax
from jax.experimental import pallas as pl
from jax.experimental.pallas import tpu as pltpu


_PAIR_PATH_MIN_N = 1024          # below this the whole-matrix batch path wins
_PAIR_TILES = (1024, 512, 256, 128)


def _cdiv(a: int, b: int) -> int:
    return -(-a // b)


def _round_up(v: int, m: int) -> int:
    return _cdiv(v, m) * m


def _vmem_budget_bytes() -> int:
    """VMEM budget with headroom: ~96 MiB on v5e/v6e, ~48 MiB on v7x."""
    cap = 64 * 1024 * 1024  # conservative fallback (v7x-sized per-core VMEM)
    try:
        info = pltpu.get_tpu_info()
        cap = int(getattr(info, "vmem_capacity_bytes", cap)) or cap
    except Exception:
        pass
    return (cap * 3) // 4   # leave ~25% for compiler scratch / pipelining


def _padded_matrix_bytes(n: int, itemsize: int) -> int:
    """Real VMEM footprint of one (N, N) tile (sublane + lane padding)."""
    sublane = max(8, 32 // itemsize)          # 8 for f32, 16 for bf16, 32 for i8
    return _round_up(n, sublane) * _round_up(n, 128) * itemsize


# --------------------------------------------------------------------------
# Batch path: whole matrices, (Bt, N, N) blocks.
# --------------------------------------------------------------------------
def _skew_batch_kernel(x_ref, o_ref, *, lower: bool):
    x = x_ref[...]                                        # (Bt, N, N)
    n = x.shape[-1]
    rows = lax.broadcasted_iota(jnp.int32, (n, n), 0)
    cols = lax.broadcasted_iota(jnp.int32, (n, n), 1)
    if lower:
        keep, keep_t = cols < rows, cols > rows           # strict lower / upper
    else:
        keep, keep_t = cols > rows, cols < rows
    xt = jnp.swapaxes(x, -2, -1)                          # per-matrix transpose (XLU)
    zero = jnp.zeros((), x.dtype)
    # out[i,j] = keep[i,j]*x[i,j] - keep[j,i]*x[j,i]
    o_ref[...] = jnp.where(keep, x, zero) - jnp.where(keep_t, xt, zero)


def _skew_batch_call(x3, lower, vmem_budget):
    b, n, _ = x3.shape
    itemsize = jnp.dtype(x3.dtype).itemsize
    padded = _padded_matrix_bytes(n, itemsize)
    # One input block + one output block, each double-buffered -> 4x per block.
    bt_vmem = max(1, vmem_budget // (4 * padded))
    target_block_bytes = max(1 << 20, vmem_budget // 6)   # ~8 MiB v7x, ~16 MiB v5e/v6e
    bt_tgt = max(1, target_block_bytes // padded)
    bt = max(1, min(b, bt_vmem, bt_tgt))
    if b >= 2:
        # Keep at least 2 grid steps so both v7x TensorCores get work.
        bt = max(1, min(bt, _cdiv(b, 2)))
    grid = (_cdiv(b, bt),)
    kernel = functools.partial(_skew_batch_kernel, lower=lower)
    return pl.pallas_call(
        kernel,
        out_shape=jax.ShapeDtypeStruct((b, n, n), x3.dtype),
        grid_spec=pltpu.PrefetchScalarGridSpec(
            num_scalar_prefetch=0,
            grid=grid,
            in_specs=[pl.BlockSpec((bt, n, n), lambda i: (i, 0, 0))],
            out_specs=pl.BlockSpec((bt, n, n), lambda i: (i, 0, 0)),
        ),
        compiler_params=pltpu.CompilerParams(
            dimension_semantics=("parallel",),
            vmem_limit_bytes=int(vmem_budget),
        ),
    )(x3)


# --------------------------------------------------------------------------
# Block-pair path: only the kept triangle is read; both mirror tiles written.
# --------------------------------------------------------------------------
def _skew_pair_kernel(orow_ref, ocol_ref, x_ref, o_ref, *, lower: bool):
    """Grid = (b, num_pairs, 2).  x_ref holds the kept-triangle block (r, c);
    s == 0 writes output block (r, c), s == 1 writes the mirror block (c, r)."""
    p = pl.program_id(1)
    s = pl.program_id(2)
    r = orow_ref[2 * p]
    c = ocol_ref[2 * p]
    x = x_ref[0]                                          # (tile, tile)
    tile = x.shape[-1]
    ii = lax.broadcasted_iota(jnp.int32, (tile, tile), 0)
    jj = lax.broadcasted_iota(jnp.int32, (tile, tile), 1)
    if lower:
        keep, keep_m = jj < ii, jj > ii                   # strict lower / its mirror
    else:
        keep, keep_m = jj > ii, jj < ii
    zero = jnp.zeros((), x.dtype)
    xt = jnp.swapaxes(x, -2, -1)                          # single XLU transpose
    # Diagonal block: full local skew result (local mask == global mask there).
    diag_val = jnp.where(keep, x, zero) - jnp.where(keep_m, xt, zero)
    # Off-diagonal pair: the kept block is entirely inside the kept triangle,
    # so (r, c) tile = X block and (c, r) tile = -X block transposed.
    off_val = jnp.where(s == 0, x, -xt)
    o_ref[0] = jnp.where(r == c, diag_val, off_val)


def _skew_pair_call(x3, lower, tile, vmem_budget):
    b, n, _ = x3.shape
    t = _cdiv(n, tile)
    # Enumerate block pairs covering the kept triangle (diag pairs included).
    pr, pc = [], []
    for i in range(t):
        for j in range(i + 1):
            if lower:
                pr.append(i), pc.append(j)                # r >= c : lower blocks
            else:
                pr.append(j), pc.append(i)                # r <= c : upper blocks
    num_pairs = len(pr)
    # Interleaved output-block tables: index 2p -> kept block, 2p+1 -> mirror.
    out_r = np.empty(2 * num_pairs, np.int32)
    out_c = np.empty(2 * num_pairs, np.int32)
    out_r[0::2], out_c[0::2] = pr, pc
    out_r[1::2], out_c[1::2] = pc, pr
    out_r = jnp.asarray(out_r)
    out_c = jnp.asarray(out_c)

    kernel = functools.partial(_skew_pair_kernel, lower=lower)
    grid = (b, num_pairs, 2)
    return pl.pallas_call(
        kernel,
        out_shape=jax.ShapeDtypeStruct((b, n, n), x3.dtype),
        grid_spec=pltpu.PrefetchScalarGridSpec(
            num_scalar_prefetch=2,
            grid=grid,
            in_specs=[
                # Kept-triangle block; index does NOT depend on s, so the
                # pipeline skips the re-fetch on the mirror step.
                pl.BlockSpec((1, tile, tile),
                             lambda bi, p, s, orow, ocol: (bi, orow[2 * p], ocol[2 * p])),
            ],
            out_specs=pl.BlockSpec(
                (1, tile, tile),
                lambda bi, p, s, orow, ocol: (bi, orow[2 * p + s], ocol[2 * p + s])),
        ),
        compiler_params=pltpu.CompilerParams(
            dimension_semantics=("parallel", "arbitrary", "arbitrary"),
            vmem_limit_bytes=int(vmem_budget),
        ),
    )(out_r, out_c, x3)


def _pick_pair_tile(n, itemsize, vmem_budget):
    for tile in _PAIR_TILES:
        fits = 4 * tile * tile * itemsize <= vmem_budget // 2   # in+out, double-buffered
        useful = 2 * tile <= _round_up(n, 128)                  # at least 2 block rows
        if fits and useful:
            return tile
    return 128


# --------------------------------------------------------------------------
# Public wrapper.
# --------------------------------------------------------------------------
def skew_forward(x: jax.Array, lower: bool = True, *, force_pair_tile=None) -> jax.Array:
    """Pallas implementation of Skew.forward for x of shape (..., N, N)."""
    if x.ndim < 2:
        raise ValueError(f"Skew expects at least a 2-D tensor, got shape {x.shape}")
    if x.shape[-2] != x.shape[-1]:
        raise ValueError(f"Skew expects a square matrix in the last two dims, got {x.shape}")

    n = x.shape[-1]
    batch_shape = x.shape[:-2]
    b = 1
    for d in batch_shape:
        b *= d
    x3 = x.reshape((b, n, n))

    itemsize = jnp.dtype(x.dtype).itemsize
    vmem_budget = _vmem_budget_bytes()
    padded = _padded_matrix_bytes(n, itemsize)

    if force_pair_tile is not None:
        out = _skew_pair_call(x3, lower, int(force_pair_tile), vmem_budget)
    elif n >= _PAIR_PATH_MIN_N or 4 * padded > vmem_budget:
        # Large matrices: block-pair grid reads only the kept triangle and
        # never needs a whole (double-buffered) matrix resident in VMEM.
        tile = _pick_pair_tile(n, itemsize, vmem_budget)
        out = _skew_pair_call(x3, lower, tile, vmem_budget)
    else:
        out = _skew_batch_call(x3, lower, vmem_budget)
    return out.reshape(x.shape)


def _skew_reference(x: jax.Array, lower: bool = True) -> jax.Array:
    t = jnp.tril(x, -1) if lower else jnp.triu(x, 1)
    return t - jnp.swapaxes(t, -2, -1)


if __name__ == "__main__":
    key = jax.random.PRNGKey(0)
    k1, k2, k3 = jax.random.split(key, 3)

    # Small matrices, non-trivial batch shape -> batch path (Bt capped to >=2 steps).
    x_small = jax.random.normal(k1, (2, 4, 16, 16), dtype=jnp.float32)
    # Modest size, forced onto the block-pair path (tile=128, 2x2 block grid).
    x_mid = jax.random.normal(k2, (2, 256, 256), dtype=jnp.float32)
    # Non-multiple-of-tile size -> exercises cdiv grid + clamped edge blocks.
    x_edge = jax.random.normal(k3, (1, 320, 320), dtype=jnp.float32)

    ok = True
    for lower in (True, False):
        for x_in, force in ((x_small, None), (x_mid, 128), (x_edge, 128)):
            out = jax.block_until_ready(
                skew_forward(x_in, lower=lower, force_pair_tile=force))
            ref = _skew_reference(x_in, lower=lower)
            ok &= bool(jnp.allclose(out, ref, atol=1e-6, rtol=1e-6))
            ok &= bool(jnp.allclose(out, -jnp.swapaxes(out, -2, -1),
                                    atol=1e-6, rtol=1e-6))

    print("KERNEL_OK" if ok else "KERNEL_MISMATCH")
</pallas_src>

<mosaic_0001>
module attributes {stable_mosaic.version = 11 : i64} {
  func.func @_skew_batch_kernel(%arg0: i32, %arg1: memref<4x16x16xf32, #tpu.memory_space<vmem>>, %arg2: memref<4x16x16xf32, #tpu.memory_space<vmem>>) attributes {dimension_semantics = [#tpu.dimension_semantics<parallel>], iteration_bounds = array<i64: 2>, scalar_prefetch = 0 : i64, scratch_operands = 0 : i64, tpu.core_type = #tpu.core_type<tc>, window_params = [{transform_indices = @transform_0, window_bounds = array<i64: 4, 16, 16>}, {transform_indices = @transform_1, window_bounds = array<i64: 4, 16, 16>}]} {
    %c0 = arith.constant 0 : index
    %c0_0 = arith.constant 0 : index
    %c0_1 = arith.constant 0 : index
    %0 = vector.load %arg1[%c0, %c0_0, %c0_1] : memref<4x16x16xf32, #tpu.memory_space<vmem>>, vector<4x16x16xf32>
    %1 = tpu.iota {dimensions = array<i32: 0>} : vector<16x16xi32>
    %2 = tpu.iota {dimensions = array<i32: 1>} : vector<16x16xi32>
    %3 = arith.cmpi slt, %2, %1 : vector<16x16xi32>
    %4 = arith.cmpi sgt, %2, %1 : vector<16x16xi32>
    %5 = tpu.transpose %0, [0, 2, 1] : vector<4x16x16xf32> -> vector<4x16x16xf32>
    %cst = arith.constant 0.000000e+00 : f32
    %6 = vector.shape_cast %3 : vector<16x16xi1> to vector<1x16x16xi1>
    %7 = vector.broadcast %6 : vector<1x16x16xi1> to vector<4x16x16xi1>
    %8 = vector.broadcast %cst : f32 to vector<4x16x16xf32>
    %9 = arith.select %7, %0, %8 : vector<4x16x16xi1>, vector<4x16x16xf32>
    %cst_2 = arith.constant 0.000000e+00 : f32
    %10 = vector.shape_cast %4 : vector<16x16xi1> to vector<1x16x16xi1>
    %11 = vector.broadcast %10 : vector<1x16x16xi1> to vector<4x16x16xi1>
    %12 = vector.broadcast %cst_2 : f32 to vector<4x16x16xf32>
    %13 = arith.select %11, %5, %12 : vector<4x16x16xi1>, vector<4x16x16xf32>
    %14 = arith.subf %9, %13 : vector<4x16x16xf32>
    %c0_3 = arith.constant 0 : index
    %c0_4 = arith.constant 0 : index
    %c0_5 = arith.constant 0 : index
    %15 = vector.load %arg2[%c0_3, %c0_4, %c0_5] : memref<4x16x16xf32, #tpu.memory_space<vmem>>, vector<4x16x16xf32>
    tpu.vector_store %arg2[%c0_3, %c0_4, %c0_5], %14 {strides = array<i32>} : memref<4x16x16xf32, #tpu.memory_space<vmem>>, vector<4x16x16xf32>,
    return
  }
  func.func @transform_0(%arg0: i32) -> (i32, i32, i32) {
    %c0_i32 = arith.constant 0 : i32
    %c0_i32_0 = arith.constant 0 : i32
    %c0_i32_1 = arith.constant 0 : i32
    return %arg0, %c0_i32, %c0_i32_0 : i32, i32, i32
  }
  func.func @transform_1(%arg0: i32) -> (i32, i32, i32) {
    %c0_i32 = arith.constant 0 : i32
    %c0_i32_0 = arith.constant 0 : i32
    %c0_i32_1 = arith.constant 0 : i32
    return %arg0, %c0_i32, %c0_i32_0 : i32, i32, i32
  }
}

</mosaic_0001>

<llo_original>
// kernel: tpu_custom_call.1
$region0: #{tpu_custom_call.1}
  #allocation0 [shape = 'u32[]', space=smem, size = 0x4, offset = 0x4, fixed_abs, tag = 'smem constant byte address 0x4 - core index']
  #allocation1 [shape = 'u32[144,128]{1,0:T(1,128)}', space=vmem, size = 0x12000, scoped, tag = 'internal scratch']
  %s0 = inlined_call_operand.hbm [shape: f32[8,16,16], index: 0, kind: input, shape index: {}]
  %s1 = inlined_call_operand.hbm [shape: f32[8,16,16], index: 1, kind: output, shape index: {}]
  %s2 = sld [smem:[#allocation0]]
  $region41: #{tpu_custom_call.1} parent=0
    _
  %s4 = ssub.s32 1, %s2
  %s5 = scalar_select 0, %s4, %s2
  $region1: #{tpu_custom_call.1} parent=0
    #allocation2 [shape = 'u8[65536]{0}', space=vmem, size = 0x10000, scoped, tag = 'input window, operand 0']
    #allocation3 [shape = 's32[2]{0}', space=sflag, size = 0x8, scoped, tag = 'scoped memory for tpu_custom_call.1']
    #allocation4 [shape = 's32[2]{0}', space=sflag, size = 0x8, scoped, tag = 'scoped memory for tpu_custom_call.1']
    #allocation5 [shape = 'u8[65536]{0}', space=vmem, size = 0x10000, scoped, tag = 'output window, operand 0']
    %6 = vsyncpa [#allocation3], 0
    %s7 = scalar_lea.sflag [#allocation3], 1
    %8 = vsyncpa %s7, 0
    %9 = vsyncpa [#allocation4], 0
    %s10 = scalar_lea.sflag [#allocation4], 1
    %11 = vsyncpa %s10, 0
    loop: start=0, step=1, limit=4
    $region2: #{tpu_custom_call.1} parent=1 // loop_pre_header
      _
    $region3: #{tpu_custom_call.1} parent=1 // loop_header
      %s13 = sphi 0, %s17
      %p14 = scmp.ge.s32.totalorder %s13, 4
      %s23 = sphi 0, %s25
      %s26 = sphi 0, %s23
      %s27 = sphi 0, %s26
      %s43 = sphi 0, %s27
      %s49 = sphi 0, %s51
      %s52 = sphi 0, %s49
      %s53 = sphi 0, %s52
      %s69 = sphi 0, %s53
    $region4: #{tpu_custom_call.1} parent=1 // loop_header_branch
      %16 = sbr.rel (%p14) target = $region8
    $region5: #{tpu_custom_call.1} parent=1 // loop_body
      %s18 = ssub.s32 %s13, 1
      %s19 = ssub.s32 %s13, 2
      %s20 = sadd.s32 %s13, 1
      %s21 = ssub.s32 %s13, %s20
      %p22 = scmp.eq.s32.totalorder %s21, 0
      %s24 = sadd.s32 %s23, 1
      %s25 = scalar_select %p22, %s23, %s24
      %p28 = pneg %p22
      %p29 = scmp.eq.s32.totalorder %s13, 1
      %p30 = por %p28, %p29
      %p31 = scmp.ne.s32.totalorder %s23, %s26
      %p32 = scmp.eq.s32.totalorder %s13, 0
      %p33 = por %p31, %p32
      %p34 = scmp.ne.s32.totalorder %s23, %s26
      %p35 = scmp.eq.s32.totalorder %s18, 1
      %p36 = por %p34, %p35
      %p37 = scmp.ne.s32.totalorder %s26, %s27
      %p38 = scmp.eq.s32.totalorder %s18, 0
      %p39 = por %p37, %p38
      %p40 = scmp.ne.s32.totalorder %s26, %s27
      %p41 = scmp.eq.s32.totalorder %s19, 1
      %p42 = por %p40, %p41
      %p44 = scmp.ne.s32.totalorder %s27, %s43
      %p45 = scmp.eq.s32.totalorder %s19, 0
      %p46 = por %p44, %p45
      %s47 = ssub.s32 %s13, %s20
      %p48 = scmp.eq.s32.totalorder %s47, 0
      %s50 = sadd.s32 %s49, 1
      %s51 = scalar_select %p48, %s49, %s50
      %p54 = pneg %p48
      %p55 = scmp.eq.s32.totalorder %s13, 1
      %p56 = por %p54, %p55
      %p57 = scmp.ne.s32.totalorder %s49, %s52
      %p58 = scmp.eq.s32.totalorder %s13, 0
      %p59 = por %p57, %p58
      %p60 = scmp.ne.s32.totalorder %s49, %s52
      %p61 = scmp.eq.s32.totalorder %s18, 1
      %p62 = por %p60, %p61
      %p63 = scmp.ne.s32.totalorder %s52, %s53
      %p64 = scmp.eq.s32.totalorder %s18, 0
      %p65 = por %p63, %p64
      %p66 = scmp.ne.s32.totalorder %s52, %s53
      %p67 = scmp.eq.s32.totalorder %s19, 1
      %p68 = por %p66, %p67
      %p70 = scmp.ne.s32.totalorder %s53, %s69
      %p71 = scmp.eq.s32.totalorder %s19, 0
      %p72 = por %p70, %p71
      %p73 = scmp.le.s32.totalorder 1, %s13
      %p74 = scmp.lt.s32.totalorder %s13, 3
      %p75 = pnand %p73, %p74
      %p76 = pneg %p75
      // Predicated region
      $region9: #{tpu_custom_call.1} parent=5 // pred_check
        _
      $region10: #{tpu_custom_call.1} parent=5 // pred_check_branch
        %78 = sbr.rel (%p75) target = $region12
      $region11: #{tpu_custom_call.1} parent=5 // pred_region
        %s79 = ssub.s32 %s13, 1
      $region12: #{tpu_custom_call.1} parent=5 // pred_fallthru
        _
      %p80 = scmp.lt.s32.totalorder %s13, 2
      // Predicated region
      $region13: #{tpu_custom_call.1} parent=5 // pred_check
        %p81 = pneg %p80
      $region14: #{tpu_custom_call.1} parent=5 // pred_check_branch
        %83 = sbr.rel (%p81) target = $region16
      $region15: #{tpu_custom_call.1} parent=5 // pred_region
        // Predicated region
        $region17: #{tpu_custom_call.1} parent=15 // pred_check
          %p84 = pneg %p33
        $region18: #{tpu_custom_call.1} parent=15 // pred_check_branch
          %86 = sbr.rel (%p84) target = $region20
        $region19: #{tpu_custom_call.1} parent=15 // pred_region
          %s87 = sand.u32 %s23, 1
          %s88 = scalar_lea.sflag [#allocation3], %s87
          %s89 = sand.u32 %s23, 1
          %s90 = smul.addr %s89, 64
          %s91 = scalar_lea.vmem [#allocation2], %s90
          %s92 = smul.u32 4, %s13
          %s94 = ssub.s32 1024, 1024
          %95 = vsyncadd %s88, %s94
          %s96 = smul.addr %s92, 2
          %s97 = smul.addr %s96, 128
          %s98 = scalar_lea.hbm %s0, %s97
          %s99 = sshll.u32 %s91, 4
          %s100 = int_to_ptr.vmem [resolvable:$true] %s99
          %105 = dma.hbm_to_vmem [thread:$0]  %s98, 1024, %s100, %s88, 128, 128, 8
        $region20: #{tpu_custom_call.1} parent=15 // pred_fallthru
          _
      $region16: #{tpu_custom_call.1} parent=5 // pred_fallthru
        _
      %p106 = scmp.le.s32.totalorder 1, %s13
      %p107 = scmp.lt.s32.totalorder %s13, 3
      %p108 = pnand %p106, %p107
      %p109 = pneg %p108
      // Predicated region
      $region21: #{tpu_custom_call.1} parent=5 // pred_check
        _
      $region22: #{tpu_custom_call.1} parent=5 // pred_check_branch
        %111 = sbr.rel (%p108) target = $region24
      $region23: #{tpu_custom_call.1} parent=5 // pred_region
        %s112 = ssub.s32 %s13, 1
        %s113 = sand.u32 %s26, 1
        %s114 = scalar_lea.sflag [#allocation3], %s113
        %s115 = sand.u32 %s26, 1
        %s116 = smul.addr %s115, 64
        %s117 = scalar_lea.vmem [#allocation2], %s116
        // Predicated region
        $region25: #{tpu_custom_call.1} parent=23 // pred_check
          %p118 = pneg %p39
        $region26: #{tpu_custom_call.1} parent=23 // pred_check_branch
          %120 = sbr.rel (%p118) target = $region28
        $region27: #{tpu_custom_call.1} parent=23 // pred_region
          %121 = dma.done %s114, 1024
        $region28: #{tpu_custom_call.1} parent=23 // pred_fallthru
          _
        %s122 = sand.u32 %s26, 1
        %s123 = scalar_lea.sflag [#allocation3], %s122
        %s124 = sand.u32 %s26, 1
        %s125 = smul.addr %s124, 64
        %s126 = scalar_lea.vmem [#allocation2], %s125
        %p127 = pneg %p39
        %p128 = pneg %p36
        %p129 = pneg %p65
        %p130 = pneg %p62
        %s131 = sand.u32 %s52, 1
        %s132 = scalar_lea.sflag [#allocation4], %s131
        %s133 = sand.u32 %s52, 1
        %s134 = smul.addr %s133, 64
        %s135 = scalar_lea.vmem [#allocation5], %s134
        %s136 = smul.u32 4, %s18
        %s137 = smul.u32 4, %s18
        %v138 = vld [vmem:[%s117] sm:$0xff]
        %v139 = vld [vmem:[%s117 + $0x8] sm:$0xff]
        %v140 = vld [vmem:[%s117 + $0x10] sm:$0xff]
        %v141 = vld [vmem:[%s117 + $0x18] sm:$0xff]
        %v142 = vld [vmem:[%s117 + $0x20] sm:$0xff]
        %v143 = vld [vmem:[%s117 + $0x28] sm:$0xff]
        %v144 = vld [vmem:[%s117 + $0x30] sm:$0xff]
        %v145 = vld [vmem:[%s117 + $0x38] sm:$0xff]
        %v146 = vlaneseq
        %v147 = vshrl.u32 %v146, 7
        %v148 = vadd.s32 %v147, 8
        %v149 = vlaneseq
        %v150 = vand.u32 %v149, 127
        %vm151 = vcmp.lt.s32.totalorder %v150, %v147
        %vm152 = vcmp.lt.s32.totalorder %v150, %v148
        %vm153 = vcmp.gt.s32.totalorder %v150, %v147
        %vm154 = vcmp.gt.s32.totalorder %v150, %v148
        %155 = vxpose.xlu0.b32.start [1/16] %v138, 128
        %156 = vxpose.xlu0.b32.cont [2/16] %v139, 128
        %157 = vxpose.xlu0.b32.cont [3/16] 0.0, 128
        %158 = vxpose.xlu0.b32.cont [4/16] 0.0, 128
        %159 = vxpose.xlu0.b32.cont [5/16] 0.0, 128
        %160 = vxpose.xlu0.b32.cont [6/16] 0.0, 128
        %161 = vxpose.xlu0.b32.cont [7/16] 0.0, 128
        %162 = vxpose.xlu0.b32.cont [8/16] 0.0, 128
        %163 = vxpose.xlu0.b32.cont [9/16] 0.0, 128
        %164 = vxpose.xlu0.b32.cont [10/16] 0.0, 128
        %165 = vxpose.xlu0.b32.cont [11/16] 0.0, 128
        %166 = vxpose.xlu0.b32.cont [12/16] 0.0, 128
        %167 = vxpose.xlu0.b32.cont [13/16] 0.0, 128
        %168 = vxpose.xlu0.b32.cont [14/16] 0.0, 128
        %169 = vxpose.xlu0.b32.cont [15/16] 0.0, 128
        %170 = vxpose.xlu0.b32.end [16/16] 0.0, 128
        %v171 = vpop.trf.xlu0
        %v172 = vpop.trf.xlu0
        %v173 = vpop.trf.xlu0
        %v174 = vpop.trf.xlu0
        %v175 = vpop.trf.xlu0
        %v176 = vpop.trf.xlu0
        %v177 = vpop.trf.xlu0
        %v178 = vpop.trf.xlu0
        %v179 = vpop.trf.xlu0
        %v180 = vpop.trf.xlu0
        %v181 = vpop.trf.xlu0
        %v182 = vpop.trf.xlu0
        %v183 = vpop.trf.xlu0
        %v184 = vpop.trf.xlu0
        %v185 = vpop.trf.xlu0
        %v186 = vpop.trf.xlu0
        %187 = vxpose.xlu0.b32.start [1/16] %v140, 128
        %188 = vxpose.xlu0.b32.cont [2/16] %v141, 128
        %189 = vxpose.xlu0.b32.cont [3/16] 0.0, 128
        %190 = vxpose.xlu0.b32.cont [4/16] 0.0, 128
        %191 = vxpose.xlu0.b32.cont [5/16] 0.0, 128
        %192 = vxpose.xlu0.b32.cont [6/16] 0.0, 128
        %193 = vxpose.xlu0.b32.cont [7/16] 0.0, 128
        %194 = vxpose.xlu0.b32.cont [8/16] 0.0, 128
        %195 = vxpose.xlu0.b32.cont [9/16] 0.0, 128
        %196 = vxpose.xlu0.b32.cont [10/16] 0.0, 128
        %197 = vxpose.xlu0.b32.cont [11/16] 0.0, 128
        %198 = vxpose.xlu0.b32.cont [12/16] 0.0, 128
        %199 = vxpose.xlu0.b32.cont [13/16] 0.0, 128
        %200 = vxpose.xlu0.b32.cont [14/16] 0.0, 128
        %201 = vxpose.xlu0.b32.cont [15/16] 0.0, 128
        %202 = vxpose.xlu0.b32.end [16/16] 0.0, 128
        %v203 = vpop.trf.xlu0
        %v204 = vpop.trf.xlu0
        %v205 = vpop.trf.xlu0
        %v206 = vpop.trf.xlu0
        %v207 = vpop.trf.xlu0
        %v208 = vpop.trf.xlu0
        %v209 = vpop.trf.xlu0
        %v210 = vpop.trf.xlu0
        %v211 = vpop.trf.xlu0
        %v212 = vpop.trf.xlu0
        %v213 = vpop.trf.xlu0
        %v214 = vpop.trf.xlu0
        %v215 = vpop.trf.xlu0
        %v216 = vpop.trf.xlu0
        %v217 = vpop.trf.xlu0
        %v218 = vpop.trf.xlu0
        %219 = vxpose.xlu0.b32.start [1/16] %v142, 128
        %220 = vxpose.xlu0.b32.cont [2/16] %v143, 128
        %221 = vxpose.xlu0.b32.cont [3/16] 0.0, 128
        %222 = vxpose.xlu0.b32.cont [4/16] 0.0, 128
        %223 = vxpose.xlu0.b32.cont [5/16] 0.0, 128
        %224 = vxpose.xlu0.b32.cont [6/16] 0.0, 128
        %225 = vxpose.xlu0.b32.cont [7/16] 0.0, 128
        %226 = vxpose.xlu0.b32.cont [8/16] 0.0, 128
        %227 = vxpose.xlu0.b32.cont [9/16] 0.0, 128
        %228 = vxpose.xlu0.b32.cont [10/16] 0.0, 128
        %229 = vxpose.xlu0.b32.cont [11/16] 0.0, 128
        %230 = vxpose.xlu0.b32.cont [12/16] 0.0, 128
        %231 = vxpose.xlu0.b32.cont [13/16] 0.0, 128
        %232 = vxpose.xlu0.b32.cont [14/16] 0.0, 128
        %233 = vxpose.xlu0.b32.cont [15/16] 0.0, 128
        %234 = vxpose.xlu0.b32.end [16/16] 0.0, 128
        %v235 = vpop.trf.xlu0
        %v236 = vpop.trf.xlu0
        %v237 = vpop.trf.xlu0
        %v238 = vpop.trf.xlu0
        %v239 = vpop.trf.xlu0
        %v240 = vpop.trf.xlu0
        %v241 = vpop.trf.xlu0
        %v242 = vpop.trf.xlu0
        %v243 = vpop.trf.xlu0
        %v244 = vpop.trf.xlu0
        %v245 = vpop.trf.xlu0
        %v246 = vpop.trf.xlu0
        %v247 = vpop.trf.xlu0
        %v248 = vpop.trf.xlu0
        %v249 = vpop.trf.xlu0
        %v250 = vpop.trf.xlu0
        %251 = vxpose.xlu0.b32.start [1/16] %v144, 128
        %252 = vxpose.xlu0.b32.cont [2/16] %v145, 128
        %253 = vxpose.xlu0.b32.cont [3/16] 0.0, 128
        %254 = vxpose.xlu0.b32.cont [4/16] 0.0, 128
        %255 = vxpose.xlu0.b32.cont [5/16] 0.0, 128
        %256 = vxpose.xlu0.b32.cont [6/16] 0.0, 128
        %257 = vxpose.xlu0.b32.cont [7/16] 0.0, 128
        %258 = vxpose.xlu0.b32.cont [8/16] 0.0, 128
        %259 = vxpose.xlu0.b32.cont [9/16] 0.0, 128
        %260 = vxpose.xlu0.b32.cont [10/16] 0.0, 128
        %261 = vxpose.xlu0.b32.cont [11/16] 0.0, 128
        %262 = vxpose.xlu0.b32.cont [12/16] 0.0, 128
        %263 = vxpose.xlu0.b32.cont [13/16] 0.0, 128
        %264 = vxpose.xlu0.b32.cont [14/16] 0.0, 128
        %265 = vxpose.xlu0.b32.cont [15/16] 0.0, 128
        %266 = vxpose.xlu0.b32.end [16/16] 0.0, 128
        %v267 = vpop.trf.xlu0
        %v268 = vpop.trf.xlu0
        %v269 = vpop.trf.xlu0
        %v270 = vpop.trf.xlu0
        %v271 = vpop.trf.xlu0
        %v272 = vpop.trf.xlu0
        %v273 = vpop.trf.xlu0
        %v274 = vpop.trf.xlu0
        %v275 = vpop.trf.xlu0
        %v276 = vpop.trf.xlu0
        %v277 = vpop.trf.xlu0
        %v278 = vpop.trf.xlu0
        %v279 = vpop.trf.xlu0
        %v280 = vpop.trf.xlu0
        %v281 = vpop.trf.xlu0
        %v282 = vpop.trf.xlu0
        %v283 = vsel %vm151, 1, 0
        %v284 = vsel %vm152, 1, 0
        %vm285 = vcmp.eq.s32.totalorder %v283, 1
        %vm286 = vcmp.eq.s32.totalorder %v284, 1
        %v287 = vsel %vm285, %v138, 0.0
        %v288 = vsel %vm286, %v139, 0.0
        %v289 = vsel %vm285, %v140, 0.0
        %v290 = vsel %vm286, %v141, 0.0
        %v291 = vsel %vm285, %v142, 0.0
        %v292 = vsel %vm286, %v143, 0.0
        %v293 = vsel %vm285, %v144, 0.0
        %v294 = vsel %vm286, %v145, 0.0
        %v295 = vsel %vm153, 1, 0
        %v296 = vsel %vm154, 1, 0
        %vm297 = vcmp.eq.s32.totalorder %v295, 1
        %vm298 = vcmp.eq.s32.totalorder %v296, 1
        %v299 = vsel %vm297, %v171, 0.0
        %v300 = vsel %vm298, %v172, 0.0
        %v301 = vsel %vm297, %v203, 0.0
        %v302 = vsel %vm298, %v204, 0.0
        %v303 = vsel %vm297, %v235, 0.0
        %v304 = vsel %vm298, %v236, 0.0
        %v305 = vsel %vm297, %v267, 0.0
        %v306 = vsel %vm298, %v268, 0.0
        %v307 = vsub.f32 %v287, %v299
        %v308 = vsub.f32 %v288, %v300
        %v309 = vsub.f32 %v289, %v301
        %v310 = vsub.f32 %v290, %v302
        %v311 = vsub.f32 %v291, %v303
        %v312 = vsub.f32 %v292, %v304
        %v313 = vsub.f32 %v293, %v305
        %v314 = vsub.f32 %v294, %v306
        %vm315 = vcmask 130048
        %316 = vst.msk [vmem:[%s135] sm:$0xff] %vm315, %v307
        %317 = vst.msk [vmem:[%s135 + $0x8] sm:$0xff] %vm315, %v308
        %318 = vst.msk [vmem:[%s135 + $0x10] sm:$0xff] %vm315, %v309
        %319 = vst.msk [vmem:[%s135 + $0x18] sm:$0xff] %vm315, %v310
        %320 = vst.msk [vmem:[%s135 + $0x20] sm:$0xff] %vm315, %v311
        %321 = vst.msk [vmem:[%s135 + $0x28] sm:$0xff] %vm315, %v312
        %322 = vst.msk [vmem:[%s135 + $0x30] sm:$0xff] %vm315, %v313
        %323 = vst.msk [vmem:[%s135 + $0x38] sm:$0xff] %vm315, %v314
        %s324 = sand.u32 %s52, 1
        %s325 = scalar_lea.sflag [#allocation4], %s324
        %s326 = sand.u32 %s52, 1
        %s327 = smul.addr %s326, 64
        %s328 = scalar_lea.vmem [#allocation5], %s327
        // Predicated region
        $region29: #{tpu_custom_call.1} parent=23 // pred_check
          %p329 = pneg %p62
        $region30: #{tpu_custom_call.1} parent=23 // pred_check_branch
          %331 = sbr.rel (%p329) target = $region32
        $region31: #{tpu_custom_call.1} parent=23 // pred_region
          %s332 = smul.u32 4, %s18
          %s334 = ssub.s32 1024, 1024
          %335 = vsyncadd %s325, %s334
          %s336 = smul.addr %s332, 2
          %s337 = smul.addr %s336, 128
          %s338 = scalar_lea.hbm %s1, %s337
          %s339 = sshll.u32 %s328, 4
          %s340 = int_to_ptr.vmem [resolvable:$true] %s339
          %345 = dma.vmem_to_hbm [thread:$0]  %s340, 1024, %s338, %s325, 128, 128, 8
        $region32: #{tpu_custom_call.1} parent=23 // pred_fallthru
          _
      $region24: #{tpu_custom_call.1} parent=5 // pred_fallthru
        _
      %p346 = scmp.le.s32.totalorder 2, %s13
      // Predicated region
      $region33: #{tpu_custom_call.1} parent=5 // pred_check
        %p347 = pneg %p346
      $region34: #{tpu_custom_call.1} parent=5 // pred_check_branch
        %349 = sbr.rel (%p347) target = $region36
      $region35: #{tpu_custom_call.1} parent=5 // pred_region
        %s350 = ssub.s32 %s13, 2
        // Predicated region
        $region37: #{tpu_custom_call.1} parent=35 // pred_check
          %p351 = pneg %p68
        $region38: #{tpu_custom_call.1} parent=35 // pred_check_branch
          %353 = sbr.rel (%p351) target = $region40
        $region39: #{tpu_custom_call.1} parent=35 // pred_region
          %s354 = sand.u32 %s53, 1
          %s355 = scalar_lea.sflag [#allocation4], %s354
          %s356 = sand.u32 %s53, 1
          %s357 = smul.addr %s356, 64
          %s358 = scalar_lea.vmem [#allocation5], %s357
          %359 = dma.done %s355, 1024
        $region40: #{tpu_custom_call.1} parent=35 // pred_fallthru
          _
      $region36: #{tpu_custom_call.1} parent=5 // pred_fallthru
        _
    $region6: #{tpu_custom_call.1} parent=1 // loop_footer
      %s17 = sadd.s32 1, %s13
    $region7: #{tpu_custom_call.1} parent=1 // loop_footer_branch
      %12 = sbr.rel target = $region3
    $region8: #{tpu_custom_call.1} parent=1 // loop_exit
      _
    %360 = vsyncpa [#allocation3], 1
    %s361 = scalar_lea.sflag [#allocation3], 1
    %362 = vsyncpa %s361, 1
    %363 = vsyncpa [#allocation4], 1
    %s364 = scalar_lea.sflag [#allocation4], 1
    %365 = vsyncpa %s364, 1

</llo_original>
